<compile_context>
chip_gen: v7x
topology: tpu7x:2x2x1
jax: 0.10.0
libtpu: 0.0.40
codegen_flags: <defaults>
</compile_context>

<pallas_src>
import jax
import jax.numpy as jnp
from jax.experimental import pallas as pl
from jax.experimental.pallas import tpu as pltpu


def _normalnn_kernel(x_ref, w1_ref, b1_ref, w2_ref, b2_ref, o_ref):
    # Layer 1 on the MXU: in-kernel cast of x to bf16 (hidden under MXU/DMA),
    # bf16 x bf16 -> f32 accumulate.
    x_bf16 = x_ref[...].astype(jnp.bfloat16)
    h = jnp.dot(x_bf16, w1_ref[...], preferred_element_type=jnp.float32)
    h = jnp.maximum(h + b1_ref[...], 0.0)          # bias + ReLU, f32 on the VPU
    # Dropout(p=0.5): eval-mode identity.
    # TODO(synk): train-mode dropout (prng mask + scale by 2) not implemented.
    # Layer 2 (256 -> 1) on the VPU/XLU: elementwise mul + lane reduction.
    # w2_ref holds the weight as a (1, 256) row; b2_ref is (1, 1).
    z = jnp.sum(h * w2_ref[...], axis=-1, keepdims=True) + b2_ref[...]
    # Exact sigmoid: exp runs on the EUP slot (nowhere near saturated).
    o_ref[...] = (1.0 / (1.0 + jnp.exp(-z))).astype(o_ref.dtype)


def _round_up(a, b):
    return (a + b - 1) // b * b


def normal_nn_forward(x, w1, b1, w2, b2, *, tile_n=2048):
    """Forward pass. x: any shape that flattens to (-1, F)."""
    f = w1.shape[0]
    hidden = w1.shape[1]

    x2d = x.reshape(-1, f)            # glue: torch x.view(-1, F); dtype preserved
    n = x2d.shape[0]

    # Parameters: w1 pre-cast to bf16 (tiny, one-time, resident); epilogue
    # params stay f32.
    w1_b = w1.astype(jnp.bfloat16)
    b1_r = b1.reshape(1, hidden).astype(jnp.float32)
    w2_row = w2.reshape(1, hidden).astype(jnp.float32)   # (256, 1) -> (1, 256)
    b2_r = b2.reshape(1, 1).astype(jnp.float32)

    # Tile selection: multiple of 8 sublanes; large enough to amortize the
    # ~0.35 us per-step overhead; >= 2 grid steps when N allows (v7x megacore);
    # per-tile x block capped (~4 MiB) so VMEM stays inside every generation's
    # scoped default without a vmem_limit_bytes override.
    tile_n = _round_up(max(8, int(tile_n)), 8)
    tile_n = min(tile_n, max(8, _round_up(pl.cdiv(n, 2), 8)))      # >= 2 steps
    x_block_cap = max(8, ((4 << 20) // max(1, 4 * f)) // 8 * 8)    # ~4 MiB cap
    tile_n = min(tile_n, x_block_cap)

    # No padding: the last block may be partial.  Garbage rows in a partial
    # block only produce output rows that are never written back (each output
    # row depends solely on its own input row).
    grid = (pl.cdiv(n, tile_n),)

    out = pl.pallas_call(
        _normalnn_kernel,
        out_shape=jax.ShapeDtypeStruct((n, 1), jnp.float32),
        grid=grid,
        in_specs=[
            pl.BlockSpec((tile_n, f), lambda i: (i, 0)),   # x: streamed per tile
            pl.BlockSpec((f, hidden), lambda i: (0, 0)),   # w1: resident in VMEM
            pl.BlockSpec((1, hidden), lambda i: (0, 0)),   # b1: resident
            pl.BlockSpec((1, hidden), lambda i: (0, 0)),   # w2 row: resident
            pl.BlockSpec((1, 1), lambda i: (0, 0)),        # b2: resident
        ],
        out_specs=pl.BlockSpec((tile_n, 1), lambda i: (i, 0)),
        compiler_params=pltpu.CompilerParams(
            dimension_semantics=("parallel",),             # megacore on v7x
        ),
    )(x2d, w1_b, b1_r, w2_row, b2_r)
    return out


def init_params(key, input_features, hidden=256):
    """Deterministic init mimicking PyTorch Linear default U(-1/sqrt(fan_in), 1/sqrt(fan_in))."""
    k1, k2, k3, k4 = jax.random.split(key, 4)
    bound1 = 1.0 / jnp.sqrt(input_features)
    bound2 = 1.0 / jnp.sqrt(hidden)
    w1 = jax.random.uniform(k1, (input_features, hidden), jnp.float32, -bound1, bound1)
    b1 = jax.random.uniform(k2, (1, hidden), jnp.float32, -bound1, bound1)
    w2 = jax.random.uniform(k3, (hidden, 1), jnp.float32, -bound2, bound2)
    b2 = jax.random.uniform(k4, (1, 1), jnp.float32, -bound2, bound2)
    return w1, b1, w2, b2


if __name__ == "__main__":
    key = jax.random.PRNGKey(0)
    kx, kp = jax.random.split(key)

    input_features = 32
    # x of shape (2, 4, 32) -> view(-1, 32) -> (8, 32)
    x = jax.random.normal(kx, (2, 4, input_features), jnp.float32)
    w1, b1, w2, b2 = init_params(kp, input_features)

    out = normal_nn_forward(x, w1, b1, w2, b2)
    jax.block_until_ready(out)

    # Pure-JAX reference with the same bf16 rounding of the layer-1 matmul
    # operands as the kernel; epilogue (bias/ReLU/layer-2/sigmoid) in f32.
    x2d = x.reshape(-1, input_features)
    xb = x2d.astype(jnp.bfloat16).astype(jnp.float32)
    w1b = w1.astype(jnp.bfloat16).astype(jnp.float32)
    h_ref = jnp.maximum(xb @ w1b + b1.reshape(1, -1), 0.0)
    ref = jax.nn.sigmoid(h_ref @ w2 + b2.reshape(1, 1))

    assert out.shape == (8, 1)
    assert bool(jnp.all(jnp.isfinite(out)))
    assert jnp.allclose(out, ref, atol=1e-2, rtol=1e-2)

    print("KERNEL_OK")
</pallas_src>

<mosaic_0001>
module attributes {stable_mosaic.version = 11 : i64} {
  func.func @_normalnn_kernel(%arg0: i32, %arg1: memref<8x32xf32, #tpu.memory_space<vmem>>, %arg2: memref<32x256xbf16, #tpu.memory_space<vmem>>, %arg3: memref<1x256xf32, #tpu.memory_space<vmem>>, %arg4: memref<1x256xf32, #tpu.memory_space<vmem>>, %arg5: memref<1x1xf32, #tpu.memory_space<vmem>>, %arg6: memref<8x1xf32, #tpu.memory_space<vmem>>) attributes {dimension_semantics = [#tpu.dimension_semantics<parallel>], iteration_bounds = array<i64: 1>, scalar_prefetch = 0 : i64, scratch_operands = 0 : i64, tpu.core_type = #tpu.core_type<tc>, window_params = [{transform_indices = @transform_0, window_bounds = array<i64: 8, 32>}, {pipeline_mode = #tpu.pipeline_mode<synchronous>, transform_indices = @transform_1, window_bounds = array<i64: 32, 256>}, {pipeline_mode = #tpu.pipeline_mode<synchronous>, transform_indices = @transform_2, window_bounds = array<i64: 1, 256>}, {pipeline_mode = #tpu.pipeline_mode<synchronous>, transform_indices = @transform_3, window_bounds = array<i64: 1, 256>}, {pipeline_mode = #tpu.pipeline_mode<synchronous>, transform_indices = @transform_4, window_bounds = array<i64: 1, 1>}, {transform_indices = @transform_5, window_bounds = array<i64: 8, 1>}]} {
    %c0 = arith.constant 0 : index
    %c0_0 = arith.constant 0 : index
    %0 = vector.load %arg1[%c0, %c0_0] : memref<8x32xf32, #tpu.memory_space<vmem>>, vector<8x32xf32>
    %1 = arith.truncf %0 : vector<8x32xf32> to vector<8x32xbf16>
    %c0_1 = arith.constant 0 : index
    %c0_2 = arith.constant 0 : index
    %2 = vector.load %arg2[%c0_1, %c0_2] : memref<32x256xbf16, #tpu.memory_space<vmem>>, vector<32x256xbf16>
    %cst = arith.constant dense<0.000000e+00> : vector<8x256xf32>
    %3 = tpu.matmul %1, %2, %cst {dimension_numbers = #tpu.dot_dimension_numbers<[1], [0], [0], [1], [0, 0, 1, 1], [], []>} : vector<8x32xbf16>, vector<32x256xbf16>, vector<8x256xf32> -> vector<8x256xf32>
    %c0_3 = arith.constant 0 : index
    %c0_4 = arith.constant 0 : index
    %4 = vector.load %arg3[%c0_3, %c0_4] : memref<1x256xf32, #tpu.memory_space<vmem>>, vector<1x256xf32>
    %5 = vector.broadcast %4 : vector<1x256xf32> to vector<8x256xf32>
    %6 = arith.addf %3, %5 : vector<8x256xf32>
    %cst_5 = arith.constant 0.000000e+00 : f32
    %7 = vector.broadcast %cst_5 : f32 to vector<8x256xf32>
    %8 = arith.maximumf %6, %7 : vector<8x256xf32>
    %c0_6 = arith.constant 0 : index
    %c0_7 = arith.constant 0 : index
    %9 = vector.load %arg4[%c0_6, %c0_7] : memref<1x256xf32, #tpu.memory_space<vmem>>, vector<1x256xf32>
    %10 = vector.broadcast %9 : vector<1x256xf32> to vector<8x256xf32>
    %11 = arith.mulf %8, %10 : vector<8x256xf32>
    %cst_8 = arith.constant dense<0.000000e+00> : vector<8xf32>
    %12 = vector.multi_reduction <add>, %11, %cst_8 [1] : vector<8x256xf32> to vector<8xf32>
    %13 = vector.shape_cast %12 : vector<8xf32> to vector<8x1xf32>
    %c0_9 = arith.constant 0 : index
    %c0_10 = arith.constant 0 : index
    %14 = vector.load %arg5[%c0_9, %c0_10] : memref<1x1xf32, #tpu.memory_space<vmem>>, vector<1x1xf32>
    %15 = vector.broadcast %14 : vector<1x1xf32> to vector<8x1xf32>
    %16 = arith.addf %13, %15 : vector<8x1xf32>
    %cst_11 = arith.constant 0.000000e+00 : f32
    %17 = vector.broadcast %cst_11 : f32 to vector<8x1xf32>
    %18 = arith.subf %17, %16 : vector<8x1xf32>
    %19 = math.exp %18 : vector<8x1xf32>
    %cst_12 = arith.constant 1.000000e+00 : f32
    %20 = vector.broadcast %cst_12 : f32 to vector<8x1xf32>
    %21 = arith.addf %20, %19 : vector<8x1xf32>
    %cst_13 = arith.constant 1.000000e+00 : f32
    %22 = vector.broadcast %cst_13 : f32 to vector<8x1xf32>
    %23 = arith.divf %22, %21 : vector<8x1xf32>
    %c0_14 = arith.constant 0 : index
    %c0_15 = arith.constant 0 : index
    %24 = vector.load %arg6[%c0_14, %c0_15] : memref<8x1xf32, #tpu.memory_space<vmem>>, vector<8x1xf32>
    tpu.vector_store %arg6[%c0_14, %c0_15], %23 {strides = array<i32>} : memref<8x1xf32, #tpu.memory_space<vmem>>, vector<8x1xf32>,
    return
  }
  func.func @transform_0(%arg0: i32) -> (i32, i32) {
    %c0_i32 = arith.constant 0 : i32
    %c0_i32_0 = arith.constant 0 : i32
    return %arg0, %c0_i32 : i32, i32
  }
  func.func @transform_1(%arg0: i32) -> (i32, i32) {
    %c0_i32 = arith.constant 0 : i32
    %c0_i32_0 = arith.constant 0 : i32
    %c0_i32_1 = arith.constant 0 : i32
    return %c0_i32, %c0_i32_0 : i32, i32
  }
  func.func @transform_2(%arg0: i32) -> (i32, i32) {
    %c0_i32 = arith.constant 0 : i32
    %c0_i32_0 = arith.constant 0 : i32
    %c0_i32_1 = arith.constant 0 : i32
    return %c0_i32, %c0_i32_0 : i32, i32
  }
  func.func @transform_3(%arg0: i32) -> (i32, i32) {
    %c0_i32 = arith.constant 0 : i32
    %c0_i32_0 = arith.constant 0 : i32
    %c0_i32_1 = arith.constant 0 : i32
    return %c0_i32, %c0_i32_0 : i32, i32
  }
  func.func @transform_4(%arg0: i32) -> (i32, i32) {
    %c0_i32 = arith.constant 0 : i32
    %c0_i32_0 = arith.constant 0 : i32
    %c0_i32_1 = arith.constant 0 : i32
    return %c0_i32, %c0_i32_0 : i32, i32
  }
  func.func @transform_5(%arg0: i32) -> (i32, i32) {
    %c0_i32 = arith.constant 0 : i32
    %c0_i32_0 = arith.constant 0 : i32
    return %arg0, %c0_i32 : i32, i32
  }
}

</mosaic_0001>

<llo_original>
// kernel: tpu_custom_call.1
$region0: #{tpu_custom_call.1}
  #allocation0 [shape = 'u32[]', space=smem, size = 0x4, offset = 0x4, fixed_abs, tag = 'smem constant byte address 0x4 - core index']
  #allocation1 [shape = 'u32[144,128]{1,0:T(1,128)}', space=vmem, size = 0x12000, scoped, tag = 'internal scratch']
  #allocation2 [shape = 'f32[1,1]{1,0:T(1,128)S(1)}', space=vmem, size = 0x200, scoped, tag = 'scoped memory for tpu_custom_call.1']
  %s0 = inlined_call_operand.hbm [shape: f32[8,32], index: 0, kind: input, shape index: {}]
  %s1 = inlined_call_operand.hbm [shape: bf16[32,256], index: 1, kind: input, shape index: {}]
  %s2 = inlined_call_operand.vmem [shape: f32[1,256], index: 2, kind: input, shape index: {}]
  %s3 = inlined_call_operand.vmem [shape: f32[1,256], index: 3, kind: input, shape index: {}]
  %s4 = inlined_call_operand.<no memory space> [shape: f32[1,1], index: 4, kind: input, shape index: {}]
  %s5 = inlined_call_operand.vmem [shape: f32[8,1], index: 5, kind: output, shape index: {}]
  %s6 = sld [smem:[#allocation0]]
  $region38: #{tpu_custom_call.1} parent=0
    _
  %s8 = ssub.s32 1, %s6
  %s9 = scalar_select 0, %s8, %s6
  %v10 = vstv %s4
  %11 = vst [vmem:[#allocation2] sm:$0x1] %v10
  $region1: #{tpu_custom_call.1} parent=0
    #allocation3 [shape = 'u8[4096]{0}', space=vmem, size = 0x1000, scoped, tag = 'input window, operand 0, single buffered']
    #allocation4 [shape = 's32[1]{0}', space=sflag, size = 0x4, scoped, tag = 'scoped memory for tpu_custom_call.1']
    #allocation5 [shape = 'u8[16384]{0}', space=vmem, size = 0x4000, scoped, tag = 'input window, operand 1, single buffered']
    #allocation6 [shape = 's32[1]{0}', space=sflag, size = 0x4, scoped, tag = 'scoped memory for tpu_custom_call.1']
    %12 = vsyncpa [#allocation4], 0
    %13 = vsyncpa [#allocation6], 0
    // Predicated region
    $region2: #{tpu_custom_call.1} parent=1 // pred_check
      _
    $region3: #{tpu_custom_call.1} parent=1 // pred_check_branch
      %15 = sbr.rel (0) target = $region5
    $region4: #{tpu_custom_call.1} parent=1 // pred_region
      %s17 = ssub.s32 128, 128
      %18 = vsyncadd [#allocation4], %s17
      %s20 = sshll.u32 [#allocation3], 4
      %s21 = int_to_ptr.vmem [resolvable:$true] %s20
      %23 = dma.hbm_to_vmem [thread:$0]  %s0, 128, %s21, [#allocation4]
    $region5: #{tpu_custom_call.1} parent=1 // pred_fallthru
      _
    // Predicated region
    $region6: #{tpu_custom_call.1} parent=1 // pred_check
      _
    $region7: #{tpu_custom_call.1} parent=1 // pred_check_branch
      %25 = sbr.rel (0) target = $region9
    $region8: #{tpu_custom_call.1} parent=1 // pred_region
      %s27 = ssub.s32 512, 512
      %28 = vsyncadd [#allocation6], %s27
      %s29 = sshll.u32 [#allocation5], 4
      %s30 = int_to_ptr.vmem [resolvable:$true] %s29
      %35 = dma.hbm_to_vmem [thread:$0]  %s1, 512, %s30, [#allocation6], 128, 128, 8
    $region9: #{tpu_custom_call.1} parent=1 // pred_fallthru
      _
    // Predicated region
    $region10: #{tpu_custom_call.1} parent=1 // pred_check
      _
    $region11: #{tpu_custom_call.1} parent=1 // pred_check_branch
      %37 = sbr.rel (0) target = $region13
    $region12: #{tpu_custom_call.1} parent=1 // pred_region
      _
    $region13: #{tpu_custom_call.1} parent=1 // pred_fallthru
      _
    // Predicated region
    $region14: #{tpu_custom_call.1} parent=1 // pred_check
      _
    $region15: #{tpu_custom_call.1} parent=1 // pred_check_branch
      %39 = sbr.rel (0) target = $region17
    $region16: #{tpu_custom_call.1} parent=1 // pred_region
      _
    $region17: #{tpu_custom_call.1} parent=1 // pred_fallthru
      _
    // Predicated region
    $region18: #{tpu_custom_call.1} parent=1 // pred_check
      _
    $region19: #{tpu_custom_call.1} parent=1 // pred_check_branch
      %41 = sbr.rel (0) target = $region21
    $region20: #{tpu_custom_call.1} parent=1 // pred_region
      _
    $region21: #{tpu_custom_call.1} parent=1 // pred_fallthru
      _
    // Predicated region
    $region22: #{tpu_custom_call.1} parent=1 // pred_check
      _
    $region23: #{tpu_custom_call.1} parent=1 // pred_check_branch
      %43 = sbr.rel (0) target = $region25
    $region24: #{tpu_custom_call.1} parent=1 // pred_region
      %44 = dma.done [#allocation4], 128
    $region25: #{tpu_custom_call.1} parent=1 // pred_fallthru
      _
    // Predicated region
    $region26: #{tpu_custom_call.1} parent=1 // pred_check
      _
    $region27: #{tpu_custom_call.1} parent=1 // pred_check_branch
      %46 = sbr.rel (0) target = $region29
    $region28: #{tpu_custom_call.1} parent=1 // pred_region
      %47 = dma.done [#allocation6], 512
    $region29: #{tpu_custom_call.1} parent=1 // pred_fallthru
      _
    %v49 = vld [vmem:[#allocation3] sm:$0xff]
    %v50 = vpack.c.bf16 %v49, %v49
    %v51 = vld [vmem:[#allocation5] sm:$0xff]
    %v52 = vld [vmem:[#allocation5 + $0x8] sm:$0xff]
    %v53 = vld [vmem:[#allocation5 + $0x10] sm:$0xff]
    %v54 = vld [vmem:[#allocation5 + $0x18] sm:$0xff]
    %v55 = vld [vmem:[%s2] sm:$0x3]
    %v57 = vlaneseq
    %v58 = vshrl.u32 %v57, 7
    %v59 = vsub.s32 0, %v58
    %v60 = vrot.slane %v55, %v59
    %v61 = vlaneseq
    %v62 = vshrl.u32 %v61, 7
    %v63 = vsub.s32 1, %v62
    %v64 = vrot.slane %v55, %v63
    %v71 = vunpack.c.l.b16 %v51
    %v72 = vunpack.c.h.b16 %v51
    %v73 = vunpack.c.l.b16 %v52
    %v74 = vunpack.c.h.b16 %v52
    %v75 = vunpack.c.l.b16 %v53
    %v76 = vunpack.c.h.b16 %v53
    %v77 = vunpack.c.l.b16 %v54
    %v78 = vunpack.c.h.b16 %v54
    %v79 = vpack.c.b16 %v73, %v71
    %v80 = vpack.c.b16 %v74, %v72
    %v81 = vpack.c.b16 %v77, %v75
    %v82 = vpack.c.b16 %v78, %v76
    %vm87 = vcmask 261120
    %v89 = vsel %vm87, %v50, 0
    %91 = vmatprep.subr.bf16.mxu0 %v80
    %92 = vmatpush1.bf16.msra.mxu0 %v79
    %93 = vmatprep.subr.bf16.mxu0 %v82
    %94 = vmatpush1.bf16.msra.mxu0 %v81
    %95 = vmatprep.subr.bf16.mxu0 0
    %96 = vmatpush1.bf16.msra.mxu0 0
    %97 = vmatprep.subr.bf16.mxu0 0
    %98 = vmatpush1.bf16.msra.mxu0 0
    %99 = vmatprep.subr.bf16.mxu0 0
    %100 = vmatpush1.bf16.msra.mxu0 0
    %101 = vmatprep.subr.bf16.mxu0 0
    %102 = vmatpush1.bf16.msra.mxu0 0
    %103 = vmatprep.subr.bf16.mxu0 0
    %104 = vmatpush1.bf16.msra.mxu0 0
    %105 = vmatprep.subr.bf16.mxu0 0
    %106 = vmatpush1.bf16.msra.mxu0 0
    %107 = vmatprep.subr.bf16.mxu0 0
    %108 = vmatpush1.bf16.msra.mxu0 0
    %109 = vmatprep.subr.bf16.mxu0 0
    %110 = vmatpush1.bf16.msra.mxu0 0
    %111 = vmatprep.subr.bf16.mxu0 0
    %112 = vmatpush1.bf16.msra.mxu0 0
    %113 = vmatprep.subr.bf16.mxu0 0
    %114 = vmatpush1.bf16.msra.mxu0 0
    %115 = vmatprep.subr.bf16.mxu0 0
    %116 = vmatpush1.bf16.msra.mxu0 0
    %117 = vmatprep.subr.bf16.mxu0 0
    %118 = vmatpush1.bf16.msra.mxu0 0
    %119 = vmatprep.subr.bf16.mxu0 0
    %120 = vmatpush1.bf16.msra.mxu0 0
    %121 = vmatprep.subr.bf16.mxu0 0
    %122 = vmatpush1.bf16.msra.mxu0 0
    %123 = vmatprep.mubr.bf16.mxu0 0
    %124 = vmatmul.mubr.bf16.gmra.mrb[0].mxu0 %v89
    %v125 = vpop.f32.mrb[0].mxu0
    %v126 = vadd.f32 %v60, %v125
    %v127 = vpop.f32.mrb[0].mxu0
    %v128 = vadd.f32 %v64, %v127
    %v129 = vpop.f32.mrb[0].mxu0
    %v130 = vpop.f32.mrb[0].mxu0
    %131 = vdwg.mxu0
    %v132 = vmax.f32 %v126, 0.0
    %v133 = vmax.f32 %v128, 0.0
    %v134 = vld [vmem:[%s3] sm:$0x3]
    %v136 = vlaneseq
    %v137 = vshrl.u32 %v136, 7
    %v138 = vsub.s32 0, %v137
    %v139 = vrot.slane %v134, %v138
    %v140 = vlaneseq
    %v141 = vshrl.u32 %v140, 7
    %v142 = vsub.s32 1, %v141
    %v143 = vrot.slane %v134, %v142
    %v146 = vmul.f32 %v132, %v139
    %v147 = vmul.f32 %v133, %v143
    %v148 = vadd.f32 %v146, %v147
    %149 = vadd.xlane.f32.xlu0 %v148
    %v150 = vpop.xlane.xlu0 %149
    %v151 = vld [vmem:[#allocation2] sm:$0x1]
    %v153 = vlaneseq
    %v154 = vshrl.u32 %v153, 7
    %v155 = vsub.s32 0, %v154
    %v156 = vrot.slane %v151, %v155
    %v158 = vadd.f32 %v150, %v156
    %v159 = vsub.f32 0.0, %v158
    %v160 = vmul.f32 %v159, 1.442695
    %v161 = vpow.pop %v160
    %v162 = vadd.f32 %v161, 1.0
    %v163 = vrcp.pop %v162
    %v164 = vmul.f32 1.0, %v163
    %vm165 = vcmask 7168
    %166 = vst.msk [vmem:[%s5] sm:$0xff] %vm165, %v164
    // Predicated region
    $region30: #{tpu_custom_call.1} parent=1 // pred_check
      _
    $region31: #{tpu_custom_call.1} parent=1 // pred_check_branch
      %168 = sbr.rel (0) target = $region33
    $region32: #{tpu_custom_call.1} parent=1 // pred_region
      _
    $region33: #{tpu_custom_call.1} parent=1 // pred_fallthru
      _
    // Predicated region
    $region34: #{tpu_custom_call.1} parent=1 // pred_check
      _
    $region35: #{tpu_custom_call.1} parent=1 // pred_check_branch
      %170 = sbr.rel (0) target = $region37
    $region36: #{tpu_custom_call.1} parent=1 // pred_region
      _
    $region37: #{tpu_custom_call.1} parent=1 // pred_fallthru
      _
    %171 = vsyncpa [#allocation4], 1
    %172 = vsyncpa [#allocation6], 1

</llo_original>
